<compile_context>
chip_gen: v7x
topology: tpu7x:2x2x1
jax: 0.10.0
libtpu: 0.0.40
codegen_flags: <defaults>
</compile_context>

<pallas_src>
import functools

import jax
import jax.numpy as jnp
from jax.experimental import pallas as pl
from jax.experimental.pallas import tpu as pltpu

KMAX = 4      # largest conv kernel size == number of fused taps
LANE = 128    # TPU lane width


def _round_up(n, m):
    return (n + m - 1) // m * m


def _default_vmem_limit_bytes():
    """Per-generation scoped-VMEM limit (v7x: 64 MiB physical; v5e/v6e: 128 MiB)."""
    try:
        kind = jax.devices()[0].device_kind.lower()
    except Exception:
        kind = ""
    if "v7" in kind:
        return 48 * 1024 * 1024          # leave headroom below v7x's 64 MiB
    if "v5" in kind or "v6" in kind:
        return 96 * 1024 * 1024          # 128 MiB physical on v5e/v6e
    return 32 * 1024 * 1024              # unknown generation: conservative


def _pick_block_b(B, T, C, OUTP, t_pad, t_chunk, vmem_limit_bytes):
    """Largest batch block (multiple of 8) whose per-step VMEM footprint fits."""
    budget = int(vmem_limit_bytes * 0.7)          # headroom for compiler scratch
    const = (2 * KMAX * C * OUTP * 2              # weight slab (double-buffered)
             + 2 * OUTP * 4)                      # bias
    per_b = (2 * T * C * 4                        # double-buffered f32 x block
             + t_pad * C * 2                      # bf16 staging scratch
             + 2 * OUTP * 4                       # double-buffered output row
             + OUTP * 4                           # running-max accumulator row
             + t_chunk * OUTP * 4                 # per-chunk f32 matmul result
             + KMAX * t_chunk * C * 2             # in-flight bf16 tap slices
             + 2 * 4)                             # lengths
    bb = max(8, (budget - const) // per_b // 8 * 8)
    if B >= 16:
        # Keep >= 2 grid steps: software pipelining + both TCs on v7x.
        bb = min(bb, _round_up(pl.cdiv(B, 2), 8))
    return int(min(bb, _round_up(B, 8)))


def _conv1d_kernel(x_ref, w_ref, b_ref, len_ref, o_ref, xpad_ref, *,
                   t_chunk, n_chunks):
    # x_ref    : VMEM [BB, T, C]       f32   (raw input block straight from HBM)
    # w_ref    : VMEM [KMAX, C, OUTP]  bf16  (tap-j weights; zero past a conv's k)
    # b_ref    : VMEM [1, OUTP]        f32
    # len_ref  : VMEM [BB, 1]          int32 (valid lengths)
    # o_ref    : VMEM [BB, OUTP]       f32
    # xpad_ref : VMEM [BB, n_chunks*t_chunk + KMAX-1, C] bf16 staging scratch
    BB, T, C = x_ref.shape
    OUTP = w_ref.shape[-1]
    TP = xpad_ref.shape[1]

    # Stage the tile once: single f32 -> bf16 down-cast (feeds the MXU directly)
    # and zero the end-of-time tail (replaces the PyTorch x_pad concatenation).
    xpad_ref[:, :T, :] = x_ref[...].astype(jnp.bfloat16)
    xpad_ref[:, T:, :] = jnp.zeros((BB, TP - T, C), jnp.bfloat16)

    lengths = len_ref[...].reshape(BB, 1, 1)              # int32

    fused = (C % LANE == 0)                               # lane-aligned concat only
    w2d = w_ref[...].reshape(KMAX * C, OUTP) if fused else None

    def chunk_time_max(t0):
        # Four time-shifted views of the staged tile (ref-level slices, bf16).
        taps = [xpad_ref[:, pl.ds(t0 + j, t_chunk), :] for j in range(KMAX)]
        if fused:
            lhs = jnp.concatenate(taps, axis=-1).reshape(BB * t_chunk, KMAX * C)
            y = jnp.dot(lhs, w2d, preferred_element_type=jnp.float32)
        else:
            y = jnp.dot(taps[0].reshape(BB * t_chunk, C), w_ref[0],
                        preferred_element_type=jnp.float32)
            for j in range(1, KMAX):
                y = y + jnp.dot(taps[j].reshape(BB * t_chunk, C), w_ref[j],
                                preferred_element_type=jnp.float32)
        y = y.reshape(BB, t_chunk, OUTP)
        # -inf where t >= length (this also kills the zero-padded t >= T rows).
        t_idx = t0 + jax.lax.broadcasted_iota(jnp.int32, (1, t_chunk, 1), 1)
        y = jnp.where(t_idx < lengths, y, -jnp.inf)
        return jnp.max(y, axis=1)                         # [BB, OUTP]

    if n_chunks == 1:
        acc = chunk_time_max(0)
    else:
        def body(ci, acc):
            t0 = pl.multiple_of(ci * t_chunk, t_chunk)
            return jnp.maximum(acc, chunk_time_max(t0))
        acc = jax.lax.fori_loop(
            0, n_chunks, body, jnp.full((BB, OUTP), -jnp.inf, jnp.float32))

    # Bias + ReLU AFTER the max: exact for length >= 1 (max/ReLU commute and the
    # bias is time-invariant); length == 0 rows give ReLU(-inf + b) == 0.
    o_ref[...] = jnp.maximum(acc + b_ref[...], 0.0).astype(o_ref.dtype)


def conv1d_forward(x, x_l, w_all, b_all, *, block_b=None, vmem_limit_bytes=None):
    """Fused Conv1d(k=1..4) + ReLU + length-masked max-over-time.

    x: [B, T, C] f32, x_l: [B] int, w_all: [KMAX, C, OUT] f32 (tap-major),
    b_all: [1, OUT] f32.  Returns [B, OUT] f32.
    """
    B, T, C = x.shape
    OUT = w_all.shape[-1]
    OUTP = _round_up(OUT, LANE)           # lane-dense matmul N / output store

    if vmem_limit_bytes is None:
        vmem_limit_bytes = _default_vmem_limit_bytes()

    # Time chunking: cap the per-chunk f32 matmul temporary so it never bounds
    # the batch block size.
    if T <= 512:
        t_chunk, n_chunks = T, 1
    else:
        n_chunks = pl.cdiv(T, 512)
        t_chunk = _round_up(pl.cdiv(T, n_chunks), 16)     # bf16 sublane packing
        n_chunks = pl.cdiv(T, t_chunk)
    t_pad = n_chunks * t_chunk + (KMAX - 1)

    if block_b is None:
        bb = _pick_block_b(B, T, C, OUTP, t_pad, t_chunk, vmem_limit_bytes)
    else:
        bb = int(block_b)
    if bb >= B:
        bb = B                            # single batch block (block == full dim)
    else:
        bb = max(8, bb - bb % 8)          # sublane-aligned batch block
    n_blocks = pl.cdiv(B, bb)             # last block clipped by Pallas if B % bb
    b_out = n_blocks * bb                 # padded rows only in the fresh output

    # Parameter prep: pad OUT to a lane multiple, cast weights to bf16.  This is
    # tiny parameter-sized work -- the big x tensor is NOT copied on the host.
    w_p = jnp.zeros((KMAX, C, OUTP), jnp.bfloat16)
    w_p = w_p.at[:, :, :OUT].set(w_all.astype(jnp.bfloat16))
    b_p = jnp.zeros((1, OUTP), jnp.float32).at[:, :OUT].set(b_all)
    lens = x_l.astype(jnp.int32).reshape(B, 1)

    kernel = functools.partial(_conv1d_kernel, t_chunk=t_chunk, n_chunks=n_chunks)
    out = pl.pallas_call(
        kernel,
        out_shape=jax.ShapeDtypeStruct((b_out, OUTP), jnp.float32),
        grid=(n_blocks,),
        in_specs=[
            pl.BlockSpec((bb, T, C), lambda i: (i, 0, 0)),        # raw f32 x
            pl.BlockSpec((KMAX, C, OUTP), lambda i: (0, 0, 0)),   # grid-invariant
            pl.BlockSpec((1, OUTP), lambda i: (0, 0)),            # grid-invariant
            pl.BlockSpec((bb, 1), lambda i: (i, 0)),              # lengths
        ],
        out_specs=pl.BlockSpec((bb, OUTP), lambda i: (i, 0)),
        scratch_shapes=[pltpu.VMEM((bb, t_pad, C), jnp.bfloat16)],
        compiler_params=pltpu.CompilerParams(
            dimension_semantics=("parallel",),    # batch blocks across the TCs
            vmem_limit_bytes=int(vmem_limit_bytes)),
    )(x, w_p, b_p, lens)
    return out[:B, :OUT]


def make_params(key, n_dim, out_dim):
    """Deterministic init for the 4 convs, fused into one tap-major slab.

    w_all[j] is the tap-j weight [n_dim, out_dim]; columns are laid out as
    [conv_k1 | conv_k2 | conv_k3 | conv_k4] (matching torch.cat order).  Taps
    beyond a conv's kernel size are zero.
    """
    out_c = out_dim // 4
    w_all = jnp.zeros((KMAX, n_dim, 4 * out_c), jnp.float32)
    b_all = jnp.zeros((1, 4 * out_c), jnp.float32)
    keys = jax.random.split(key, 8)
    for ki in range(4):                   # kernel size = ki + 1
        ksz = ki + 1
        scale = 1.0 / (n_dim * ksz) ** 0.5    # ~ PyTorch Conv1d default init range
        w_k = jax.random.uniform(keys[2 * ki], (ksz, n_dim, out_c),
                                 minval=-scale, maxval=scale, dtype=jnp.float32)
        bias = jax.random.uniform(keys[2 * ki + 1], (out_c,),
                                  minval=-scale, maxval=scale, dtype=jnp.float32)
        w_all = w_all.at[:ksz, :, ki * out_c:(ki + 1) * out_c].set(w_k)
        b_all = b_all.at[0, ki * out_c:(ki + 1) * out_c].set(bias)
    return w_all, b_all


def reference_forward(x, x_l, w_all, b_all, *, mirror_bf16=True):
    """Pure-JAX reference in the PyTorch op order (conv -> ReLU -> masked max).

    mirror_bf16=True mimics the kernel's bf16 cast of x / weights (tight
    tolerance); mirror_bf16=False is the true f32 reference (loose tolerance).
    Assumes x_l >= 1 (length-0 rows would be -inf here vs 0 in the kernel).
    """
    B, T, C = x.shape
    if mirror_bf16:
        xr = x.astype(jnp.bfloat16).astype(jnp.float32)
        wr = w_all.astype(jnp.bfloat16).astype(jnp.float32)
    else:
        xr, wr = x, w_all
    x_pad = jnp.concatenate([xr, jnp.zeros((B, KMAX - 1, C), jnp.float32)], 1)
    acc = jnp.zeros((B, T, w_all.shape[-1]), jnp.float32) + b_all[0]
    for j in range(KMAX):
        acc = acc + jnp.einsum('btc,co->bto', x_pad[:, j:j + T, :], wr[j],
                               precision=jax.lax.Precision.HIGHEST)
    acc = jnp.maximum(acc, 0.0)                          # ReLU before the max
    t = jnp.arange(T)[None, :, None]
    masked = jnp.where(t < x_l[:, None, None], acc, -jnp.inf)
    return masked.max(axis=1)


if __name__ == "__main__":
    B, T, N_DIM, OUT_DIM = 2, 8, 32, 32    # out_dim/4 = 8 channels per conv

    key = jax.random.PRNGKey(0)
    k_x, k_p = jax.random.split(key)
    x = jax.random.normal(k_x, (B, T, N_DIM), dtype=jnp.float32)
    x_l = jnp.array([5, 8], dtype=jnp.int32)     # valid lengths per batch

    w_all, b_all = make_params(k_p, N_DIM, OUT_DIM)

    out = jax.block_until_ready(conv1d_forward(x, x_l, w_all, b_all))
    assert out.shape == (B, OUT_DIM)

    ref_bf16 = reference_forward(x, x_l, w_all, b_all, mirror_bf16=True)
    ref_f32 = reference_forward(x, x_l, w_all, b_all, mirror_bf16=False)
    assert jnp.allclose(out, ref_bf16, atol=1e-4, rtol=1e-4), "mismatch vs bf16 ref"
    assert jnp.allclose(out, ref_f32, atol=5e-2, rtol=5e-2), "mismatch vs f32 ref"

    print("KERNEL_OK")
</pallas_src>

<mosaic_0001>
module attributes {stable_mosaic.version = 11 : i64} {
  func.func @_conv1d_kernel(%arg0: i32, %arg1: memref<2x8x32xf32, #tpu.memory_space<vmem>>, %arg2: memref<4x32x128xbf16, #tpu.memory_space<vmem>>, %arg3: memref<1x128xf32, #tpu.memory_space<vmem>>, %arg4: memref<2x1xi32, #tpu.memory_space<vmem>>, %arg5: memref<2x128xf32, #tpu.memory_space<vmem>>, %arg6: memref<2x11x32xbf16, #tpu.memory_space<vmem>>) attributes {dimension_semantics = [#tpu.dimension_semantics<parallel>], iteration_bounds = array<i64: 1>, scalar_prefetch = 0 : i64, scratch_operands = 1 : i64, tpu.core_type = #tpu.core_type<tc>, window_params = [{transform_indices = @transform_0, window_bounds = array<i64: 2, 8, 32>}, {pipeline_mode = #tpu.pipeline_mode<synchronous>, transform_indices = @transform_1, window_bounds = array<i64: 4, 32, 128>}, {pipeline_mode = #tpu.pipeline_mode<synchronous>, transform_indices = @transform_2, window_bounds = array<i64: 1, 128>}, {transform_indices = @transform_3, window_bounds = array<i64: 2, 1>}, {transform_indices = @transform_4, window_bounds = array<i64: 2, 128>}]} {
    %c0 = arith.constant 0 : index
    %c0_0 = arith.constant 0 : index
    %c0_1 = arith.constant 0 : index
    %0 = vector.load %arg1[%c0, %c0_0, %c0_1] : memref<2x8x32xf32, #tpu.memory_space<vmem>>, vector<2x8x32xf32>
    %1 = arith.truncf %0 : vector<2x8x32xf32> to vector<2x8x32xbf16>
    %c0_2 = arith.constant 0 : index
    %c0_3 = arith.constant 0 : index
    %c0_4 = arith.constant 0 : index
    %2 = vector.load %arg6[%c0_2, %c0_3, %c0_4] : memref<2x11x32xbf16, #tpu.memory_space<vmem>>, vector<2x8x32xbf16>
    tpu.vector_store %arg6[%c0_2, %c0_3, %c0_4], %1 {strides = array<i32>} : memref<2x11x32xbf16, #tpu.memory_space<vmem>>, vector<2x8x32xbf16>,
    %cst = arith.constant 0.000000e+00 : bf16
    %3 = vector.broadcast %cst : bf16 to vector<2x3x32xbf16>
    %c0_5 = arith.constant 0 : index
    %c8 = arith.constant 8 : index
    %c0_6 = arith.constant 0 : index
    %4 = vector.load %arg6[%c0_5, %c8, %c0_6] : memref<2x11x32xbf16, #tpu.memory_space<vmem>>, vector<2x3x32xbf16>
    tpu.vector_store %arg6[%c0_5, %c8, %c0_6], %3 {strides = array<i32>} : memref<2x11x32xbf16, #tpu.memory_space<vmem>>, vector<2x3x32xbf16>,
    %c0_7 = arith.constant 0 : index
    %c0_8 = arith.constant 0 : index
    %5 = vector.load %arg4[%c0_7, %c0_8] : memref<2x1xi32, #tpu.memory_space<vmem>>, vector<2x1xi32>
    %6 = vector.shape_cast %5 : vector<2x1xi32> to vector<2x1x1xi32>
    %c0_9 = arith.constant 0 : index
    %c0_10 = arith.constant 0 : index
    %c0_11 = arith.constant 0 : index
    %7 = vector.load %arg6[%c0_9, %c0_10, %c0_11] : memref<2x11x32xbf16, #tpu.memory_space<vmem>>, vector<2x8x32xbf16>
    %c0_12 = arith.constant 0 : index
    %c1 = arith.constant 1 : index
    %c0_13 = arith.constant 0 : index
    %8 = vector.load %arg6[%c0_12, %c1, %c0_13] : memref<2x11x32xbf16, #tpu.memory_space<vmem>>, vector<2x8x32xbf16>
    %c0_14 = arith.constant 0 : index
    %c2 = arith.constant 2 : index
    %c0_15 = arith.constant 0 : index
    %9 = vector.load %arg6[%c0_14, %c2, %c0_15] : memref<2x11x32xbf16, #tpu.memory_space<vmem>>, vector<2x8x32xbf16>
    %c0_16 = arith.constant 0 : index
    %c3 = arith.constant 3 : index
    %c0_17 = arith.constant 0 : index
    %10 = vector.load %arg6[%c0_16, %c3, %c0_17] : memref<2x11x32xbf16, #tpu.memory_space<vmem>>, vector<2x8x32xbf16>
    %11 = vector.shape_cast %7 : vector<2x8x32xbf16> to vector<16x32xbf16>
    %c0_18 = arith.constant 0 : index
    %c0_19 = arith.constant 0 : index
    %c0_20 = arith.constant 0 : index
    %12 = vector.load %arg2[%c0_18, %c0_19, %c0_20] : memref<4x32x128xbf16, #tpu.memory_space<vmem>>, vector<1x32x128xbf16>
    %13 = vector.shape_cast %12 : vector<1x32x128xbf16> to vector<32x128xbf16>
    %cst_21 = arith.constant dense<0.000000e+00> : vector<16x128xf32>
    %14 = tpu.matmul %11, %13, %cst_21 {dimension_numbers = #tpu.dot_dimension_numbers<[1], [0], [0], [1], [0, 0, 1, 1], [], []>} : vector<16x32xbf16>, vector<32x128xbf16>, vector<16x128xf32> -> vector<16x128xf32>
    %15 = vector.shape_cast %8 : vector<2x8x32xbf16> to vector<16x32xbf16>
    %c1_22 = arith.constant 1 : index
    %c0_23 = arith.constant 0 : index
    %c0_24 = arith.constant 0 : index
    %16 = vector.load %arg2[%c1_22, %c0_23, %c0_24] : memref<4x32x128xbf16, #tpu.memory_space<vmem>>, vector<1x32x128xbf16>
    %17 = vector.shape_cast %16 : vector<1x32x128xbf16> to vector<32x128xbf16>
    %cst_25 = arith.constant dense<0.000000e+00> : vector<16x128xf32>
    %18 = tpu.matmul %15, %17, %cst_25 {dimension_numbers = #tpu.dot_dimension_numbers<[1], [0], [0], [1], [0, 0, 1, 1], [], []>} : vector<16x32xbf16>, vector<32x128xbf16>, vector<16x128xf32> -> vector<16x128xf32>
    %19 = arith.addf %14, %18 : vector<16x128xf32>
    %20 = vector.shape_cast %9 : vector<2x8x32xbf16> to vector<16x32xbf16>
    %c2_26 = arith.constant 2 : index
    %c0_27 = arith.constant 0 : index
    %c0_28 = arith.constant 0 : index
    %21 = vector.load %arg2[%c2_26, %c0_27, %c0_28] : memref<4x32x128xbf16, #tpu.memory_space<vmem>>, vector<1x32x128xbf16>
    %22 = vector.shape_cast %21 : vector<1x32x128xbf16> to vector<32x128xbf16>
    %cst_29 = arith.constant dense<0.000000e+00> : vector<16x128xf32>
    %23 = tpu.matmul %20, %22, %cst_29 {dimension_numbers = #tpu.dot_dimension_numbers<[1], [0], [0], [1], [0, 0, 1, 1], [], []>} : vector<16x32xbf16>, vector<32x128xbf16>, vector<16x128xf32> -> vector<16x128xf32>
    %24 = arith.addf %19, %23 : vector<16x128xf32>
    %25 = vector.shape_cast %10 : vector<2x8x32xbf16> to vector<16x32xbf16>
    %c3_30 = arith.constant 3 : index
    %c0_31 = arith.constant 0 : index
    %c0_32 = arith.constant 0 : index
    %26 = vector.load %arg2[%c3_30, %c0_31, %c0_32] : memref<4x32x128xbf16, #tpu.memory_space<vmem>>, vector<1x32x128xbf16>
    %27 = vector.shape_cast %26 : vector<1x32x128xbf16> to vector<32x128xbf16>
    %cst_33 = arith.constant dense<0.000000e+00> : vector<16x128xf32>
    %28 = tpu.matmul %25, %27, %cst_33 {dimension_numbers = #tpu.dot_dimension_numbers<[1], [0], [0], [1], [0, 0, 1, 1], [], []>} : vector<16x32xbf16>, vector<32x128xbf16>, vector<16x128xf32> -> vector<16x128xf32>
    %29 = arith.addf %24, %28 : vector<16x128xf32>
    %30 = vector.shape_cast %29 : vector<16x128xf32> to vector<2x8x128xf32>
    %31 = tpu.iota {dimensions = array<i32: 1>} : vector<1x8x1xi32>
    %c0_i32 = arith.constant 0 : i32
    %32 = vector.broadcast %c0_i32 : i32 to vector<1x8x1xi32>
    %33 = arith.addi %32, %31 : vector<1x8x1xi32>
    %34 = vector.broadcast %33 : vector<1x8x1xi32> to vector<2x8x1xi32>
    %35 = vector.broadcast %6 : vector<2x1x1xi32> to vector<2x8x1xi32>
    %36 = arith.cmpi slt, %34, %35 : vector<2x8x1xi32>
    %cst_34 = arith.constant 0xFF800000 : f32
    %37 = vector.shape_cast %36 : vector<2x8x1xi1> to vector<2x8x1xi1>
    %38 = vector.broadcast %37 : vector<2x8x1xi1> to vector<2x8x128xi1>
    %39 = vector.broadcast %cst_34 : f32 to vector<2x8x128xf32>
    %40 = arith.select %38, %30, %39 : vector<2x8x128xi1>, vector<2x8x128xf32>
    %cst_35 = arith.constant dense<0xFF800000> : vector<2x128xf32>
    %41 = vector.multi_reduction <maximumf>, %40, %cst_35 [1] : vector<2x8x128xf32> to vector<2x128xf32>
    %c0_36 = arith.constant 0 : index
    %c0_37 = arith.constant 0 : index
    %42 = vector.load %arg3[%c0_36, %c0_37] : memref<1x128xf32, #tpu.memory_space<vmem>>, vector<1x128xf32>
    %43 = vector.broadcast %42 : vector<1x128xf32> to vector<2x128xf32>
    %44 = arith.addf %41, %43 : vector<2x128xf32>
    %cst_38 = arith.constant 0.000000e+00 : f32
    %45 = vector.broadcast %cst_38 : f32 to vector<2x128xf32>
    %46 = arith.maximumf %44, %45 : vector<2x128xf32>
    %c0_39 = arith.constant 0 : index
    %c0_40 = arith.constant 0 : index
    %47 = vector.load %arg5[%c0_39, %c0_40] : memref<2x128xf32, #tpu.memory_space<vmem>>, vector<2x128xf32>
    tpu.vector_store %arg5[%c0_39, %c0_40], %46 {strides = array<i32>} : memref<2x128xf32, #tpu.memory_space<vmem>>, vector<2x128xf32>,
    return
  }
  func.func @transform_0(%arg0: i32) -> (i32, i32, i32) {
    %c0_i32 = arith.constant 0 : i32
    %c0_i32_0 = arith.constant 0 : i32
    %c0_i32_1 = arith.constant 0 : i32
    return %arg0, %c0_i32, %c0_i32_0 : i32, i32, i32
  }
  func.func @transform_1(%arg0: i32) -> (i32, i32, i32) {
    %c0_i32 = arith.constant 0 : i32
    %c0_i32_0 = arith.constant 0 : i32
    %c0_i32_1 = arith.constant 0 : i32
    %c0_i32_2 = arith.constant 0 : i32
    return %c0_i32, %c0_i32_0, %c0_i32_1 : i32, i32, i32
  }
  func.func @transform_2(%arg0: i32) -> (i32, i32) {
    %c0_i32 = arith.constant 0 : i32
    %c0_i32_0 = arith.constant 0 : i32
    %c0_i32_1 = arith.constant 0 : i32
    return %c0_i32, %c0_i32_0 : i32, i32
  }
  func.func @transform_3(%arg0: i32) -> (i32, i32) {
    %c0_i32 = arith.constant 0 : i32
    %c0_i32_0 = arith.constant 0 : i32
    return %arg0, %c0_i32 : i32, i32
  }
  func.func @transform_4(%arg0: i32) -> (i32, i32) {
    %c0_i32 = arith.constant 0 : i32
    %c0_i32_0 = arith.constant 0 : i32
    return %arg0, %c0_i32 : i32, i32
  }
}

</mosaic_0001>

<llo_original>
// kernel: tpu_custom_call.1
$region0: #{tpu_custom_call.1}
  #allocation0 [shape = 'u32[]', space=smem, size = 0x4, offset = 0x4, fixed_abs, tag = 'smem constant byte address 0x4 - core index']
  #allocation1 [shape = 'u32[144,128]{1,0:T(1,128)}', space=vmem, size = 0x12000, scoped, tag = 'internal scratch']
  #allocation2 [shape = 'bf16[2,11,32]{2,1,0:T(8,128)(2,1)}', space=vmem, size = 0x2000, scoped, tag = 'scratch operand']
  %s0 = inlined_call_operand.hbm [shape: f32[2,8,32], index: 0, kind: input, shape index: {}]
  %s1 = inlined_call_operand.hbm [shape: bf16[4,32,128], index: 1, kind: input, shape index: {}]
  %s2 = inlined_call_operand.vmem [shape: f32[1,128], index: 2, kind: input, shape index: {}]
  %s3 = inlined_call_operand.vmem [shape: s32[2,1], index: 3, kind: input, shape index: {}]
  %s4 = inlined_call_operand.hbm [shape: f32[2,128], index: 4, kind: output, shape index: {}]
  %s5 = sld [smem:[#allocation0]]
  $region34: #{tpu_custom_call.1} parent=0
    _
  %s7 = ssub.s32 1, %s5
  %s8 = scalar_select 0, %s7, %s5
  $region1: #{tpu_custom_call.1} parent=0
    #allocation3 [shape = 'u8[8192]{0}', space=vmem, size = 0x2000, scoped, tag = 'input window, operand 0, single buffered']
    #allocation4 [shape = 's32[1]{0}', space=sflag, size = 0x4, scoped, tag = 'scoped memory for tpu_custom_call.1']
    #allocation5 [shape = 's32[1]{0}', space=sflag, size = 0x4, scoped, tag = 'scoped memory for tpu_custom_call.1']
    #allocation6 [shape = 'u8[32768]{0}', space=vmem, size = 0x8000, scoped, tag = 'input window, operand 1, single buffered']
    #allocation7 [shape = 's32[1]{0}', space=sflag, size = 0x4, scoped, tag = 'scoped memory for tpu_custom_call.1']
    #allocation8 [shape = 'u8[1024]{0}', space=vmem, size = 0x400, scoped, tag = 'output window, operand 0, single buffered']
    %9 = vsyncpa [#allocation4], 0
    %10 = vsyncpa [#allocation7], 0
    %11 = vsyncpa [#allocation5], 0
    // Predicated region
    $region2: #{tpu_custom_call.1} parent=1 // pred_check
      _
    $region3: #{tpu_custom_call.1} parent=1 // pred_check_branch
      %13 = sbr.rel (0) target = $region5
    $region4: #{tpu_custom_call.1} parent=1 // pred_region
      %s15 = ssub.s32 256, 256
      %16 = vsyncadd [#allocation4], %s15
      %s17 = sshll.u32 [#allocation3], 4
      %s18 = int_to_ptr.vmem [resolvable:$true] %s17
      %23 = dma.hbm_to_vmem [thread:$0]  %s0, 256, %s18, [#allocation4], 128, 128, 8
    $region5: #{tpu_custom_call.1} parent=1 // pred_fallthru
      _
    // Predicated region
    $region6: #{tpu_custom_call.1} parent=1 // pred_check
      _
    $region7: #{tpu_custom_call.1} parent=1 // pred_check_branch
      %25 = sbr.rel (0) target = $region9
    $region8: #{tpu_custom_call.1} parent=1 // pred_region
      %s27 = ssub.s32 1024, 1024
      %28 = vsyncadd [#allocation7], %s27
      %s29 = sshll.u32 [#allocation6], 4
      %s30 = int_to_ptr.vmem [resolvable:$true] %s29
      %35 = dma.hbm_to_vmem [thread:$0]  %s1, 1024, %s30, [#allocation7], 64, 64, 4
    $region9: #{tpu_custom_call.1} parent=1 // pred_fallthru
      _
    // Predicated region
    $region10: #{tpu_custom_call.1} parent=1 // pred_check
      _
    $region11: #{tpu_custom_call.1} parent=1 // pred_check_branch
      %37 = sbr.rel (0) target = $region13
    $region12: #{tpu_custom_call.1} parent=1 // pred_region
      _
    $region13: #{tpu_custom_call.1} parent=1 // pred_fallthru
      _
    // Predicated region
    $region14: #{tpu_custom_call.1} parent=1 // pred_check
      _
    $region15: #{tpu_custom_call.1} parent=1 // pred_check_branch
      %39 = sbr.rel (0) target = $region17
    $region16: #{tpu_custom_call.1} parent=1 // pred_region
      _
    $region17: #{tpu_custom_call.1} parent=1 // pred_fallthru
      _
    // Predicated region
    $region18: #{tpu_custom_call.1} parent=1 // pred_check
      _
    $region19: #{tpu_custom_call.1} parent=1 // pred_check_branch
      %41 = sbr.rel (0) target = $region21
    $region20: #{tpu_custom_call.1} parent=1 // pred_region
      %42 = dma.done [#allocation4], 256
    $region21: #{tpu_custom_call.1} parent=1 // pred_fallthru
      _
    // Predicated region
    $region22: #{tpu_custom_call.1} parent=1 // pred_check
      _
    $region23: #{tpu_custom_call.1} parent=1 // pred_check_branch
      %44 = sbr.rel (0) target = $region25
    $region24: #{tpu_custom_call.1} parent=1 // pred_region
      %45 = dma.done [#allocation7], 1024
    $region25: #{tpu_custom_call.1} parent=1 // pred_fallthru
      _
    %v47 = vld [vmem:[#allocation3] sm:$0xff]
    %v48 = vld [vmem:[#allocation3 + $0x8] sm:$0xff]
    %v49 = vpack.c.bf16 %v47, %v47
    %v50 = vpack.c.bf16 %v48, %v48
    %vm51 = vcmask 257024
    %52 = vst.msk [vmem:[#allocation2] sm:$0xf] %vm51, %v49
    %53 = vst.msk [vmem:[#allocation2 + $0x8] sm:$0xf] %vm51, %v50
    %vm54 = vcmask 254976
    %vm55 = vsmask.f32 1280
    %vm56 = vmand %vm54, %vm55
    %v57 = vld [vmem:[#allocation2 + $0x4] sm:$0x3]
    %v58 = vsel %vm56, 0, %v57
    %59 = vst [vmem:[#allocation2 + $0x4] sm:$0x3] %v58
    %v60 = vld [vmem:[#allocation2 + $0xc] sm:$0x3]
    %v61 = vsel %vm56, 0, %v60
    %62 = vst [vmem:[#allocation2 + $0xc] sm:$0x3] %v61
    %v63 = vld [vmem:[%s3] sm:$0x3]
    %v65 = vunpack.c.l.s4 1966171168
    %v66 = vunpack.c.0.s8 %v65
    %v67 = vlaneseq
    %v68 = vshrl.u32 %v67, 7
    %v69 = vsub.s32 %v66, %v68
    %v70 = vrot.slane %v63, %v69
    %v71 = vcombine.high %v70, %v70
    %v73 = vunpack.c.l.s4 1966171168
    %v74 = vunpack.c.0.s8 %v73
    %v75 = vlaneseq
    %v76 = vshrl.u32 %v75, 7
    %v77 = vsub.s32 %v74, %v76
    %v78 = vrot.slane %v70, %v77
    %v80 = vunpack.c.l.s4 1966171168
    %v81 = vunpack.c.0.s8 %v80
    %v82 = vlaneseq
    %v83 = vshrl.u32 %v82, 7
    %v84 = vsub.s32 %v81, %v83
    %v85 = vrot.slane %v71, %v84
    %v86 = vld [vmem:[#allocation2] sm:$0xf]
    %v87 = vld [vmem:[#allocation2 + $0x8] sm:$0xf]
    %v88 = vld [vmem:[#allocation2 + $0x4] sm:$0x1]
    %v89 = vld [vmem:[#allocation2 + $0xc] sm:$0x1]
    %v90 = vld [vmem:[#allocation2] sm:$0xe]
    %v91 = vld [vmem:[#allocation2 + $0x8] sm:$0xe]
    %v92 = vld [vmem:[#allocation2 + $0x4] sm:$0x3]
    %v93 = vld [vmem:[#allocation2 + $0xc] sm:$0x3]
    %v94 = vld [vmem:[#allocation6] sm:$0xf]
    %v95 = vld [vmem:[#allocation6 + $0x4] sm:$0xf]
    %v96 = vld [vmem:[#allocation6 + $0x8] sm:$0xf]
    %v97 = vld [vmem:[#allocation6 + $0xc] sm:$0xf]
    %vm98 = vsmask.f32 3328
    %vm99 = vsmask.f32 7440
    %vm100 = vmor %vm98, %vm99
    %v102 = vshrl.u32 %v86, 16
    %v104 = vrot.slane %v102, 4
    %v105 = vshll.u32 %v86, 16
    %v107 = vrot.slane %v105, 5
    %v108 = vor.u32 %v104, %v107
    %v109 = vrot.slane %v108, 4
    %v111 = vshll.u32 %v88, 16
    %v113 = vrot.slane %v111, 5
    %v114 = vsel %vm100, %v109, %v113
    %v116 = vshrl.u32 %v87, 16
    %v118 = vrot.slane %v116, 4
    %v119 = vshll.u32 %v87, 16
    %v121 = vrot.slane %v119, 5
    %v122 = vor.u32 %v118, %v121
    %v123 = vrot.slane %v122, 4
    %v125 = vshll.u32 %v89, 16
    %v127 = vrot.slane %v125, 5
    %v128 = vsel %vm100, %v123, %v127
    %s129 = scalar_lea.vmem [#allocation6], 16
    %v130 = vld [vmem:[%s129] sm:$0xf]
    %v131 = vld [vmem:[%s129 + $0x4] sm:$0xf]
    %v132 = vld [vmem:[%s129 + $0x8] sm:$0xf]
    %v133 = vld [vmem:[%s129 + $0xc] sm:$0xf]
    %v134 = vunpack.c.l.b16 %v114
    %v135 = vunpack.c.l.b16 %v128
    %v136 = vpack.c.b16 %v135, %v134
    %v141 = vunpack.c.l.b16 %v130
    %v142 = vunpack.c.l.b16 %v131
    %v143 = vunpack.c.l.b16 %v132
    %v144 = vunpack.c.l.b16 %v133
    %v145 = vpack.c.b16 %v142, %v141
    %v146 = vpack.c.b16 %v144, %v143
    %vm149 = vcmask 261120
    %v151 = vsel %vm149, %v136, 0
    %153 = vmatprep.subr.bf16.mxu0 0
    %154 = vmatpush1.bf16.msra.mxu0 %v145
    %155 = vmatprep.subr.bf16.mxu0 0
    %156 = vmatpush1.bf16.msra.mxu0 %v146
    %157 = vmatprep.subr.bf16.mxu0 0
    %158 = vmatpush1.bf16.msra.mxu0 0
    %159 = vmatprep.subr.bf16.mxu0 0
    %160 = vmatpush1.bf16.msra.mxu0 0
    %161 = vmatprep.subr.bf16.mxu0 0
    %162 = vmatpush1.bf16.msra.mxu0 0
    %163 = vmatprep.subr.bf16.mxu0 0
    %164 = vmatpush1.bf16.msra.mxu0 0
    %165 = vmatprep.subr.bf16.mxu0 0
    %166 = vmatpush1.bf16.msra.mxu0 0
    %167 = vmatprep.subr.bf16.mxu0 0
    %168 = vmatpush1.bf16.msra.mxu0 0
    %169 = vmatprep.subr.bf16.mxu0 0
    %170 = vmatpush1.bf16.msra.mxu0 0
    %171 = vmatprep.subr.bf16.mxu0 0
    %172 = vmatpush1.bf16.msra.mxu0 0
    %173 = vmatprep.subr.bf16.mxu0 0
    %174 = vmatpush1.bf16.msra.mxu0 0
    %175 = vmatprep.subr.bf16.mxu0 0
    %176 = vmatpush1.bf16.msra.mxu0 0
    %177 = vmatprep.subr.bf16.mxu0 0
    %178 = vmatpush1.bf16.msra.mxu0 0
    %179 = vmatprep.subr.bf16.mxu0 0
    %180 = vmatpush1.bf16.msra.mxu0 0
    %181 = vmatprep.subr.bf16.mxu0 0
    %182 = vmatpush1.bf16.msra.mxu0 0
    %183 = vmatprep.subr.bf16.mxu0 0
    %184 = vmatpush1.bf16.msra.mxu0 0
    %185 = vmatprep.mubr.bf16.mxu0 0
    %186 = vmatmul.mubr.bf16.gmra.mrb[0].mxu0 %v151
    %v187 = vpop.f32.mrb[0].mxu0
    %v188 = vadd.f32 0.0, %v187
    %v189 = vpop.f32.mrb[0].mxu0
    %v190 = vpop.f32.mrb[0].mxu0
    %v191 = vadd.f32 0.0, %v190
    %v192 = vpop.f32.mrb[0].mxu0
    %193 = vdwg.mxu0
    %v196 = vunpack.c.l.b16 %v86
    %v197 = vunpack.c.l.b16 %v87
    %v198 = vpack.c.b16 %v197, %v196
    %v203 = vunpack.c.l.b16 %v94
    %v204 = vunpack.c.l.b16 %v95
    %v205 = vunpack.c.l.b16 %v96
    %v206 = vunpack.c.l.b16 %v97
    %v207 = vpack.c.b16 %v204, %v203
    %v208 = vpack.c.b16 %v206, %v205
    %v212 = vsel %vm149, %v198, 0
    %214 = vmatprep.subr.bf16.mxu0 0
    %215 = vmatpush1.bf16.msra.mxu0 %v207
    %216 = vmatprep.subr.bf16.mxu0 0
    %217 = vmatpush1.bf16.msra.mxu0 %v208
    %218 = vmatprep.subr.bf16.mxu0 0
    %219 = vmatpush1.bf16.msra.mxu0 0
    %220 = vmatprep.subr.bf16.mxu0 0
    %221 = vmatpush1.bf16.msra.mxu0 0
    %222 = vmatprep.subr.bf16.mxu0 0
    %223 = vmatpush1.bf16.msra.mxu0 0
    %224 = vmatprep.subr.bf16.mxu0 0
    %225 = vmatpush1.bf16.msra.mxu0 0
    %226 = vmatprep.subr.bf16.mxu0 0
    %227 = vmatpush1.bf16.msra.mxu0 0
    %228 = vmatprep.subr.bf16.mxu0 0
    %229 = vmatpush1.bf16.msra.mxu0 0
    %230 = vmatprep.subr.bf16.mxu0 0
    %231 = vmatpush1.bf16.msra.mxu0 0
    %232 = vmatprep.subr.bf16.mxu0 0
    %233 = vmatpush1.bf16.msra.mxu0 0
    %234 = vmatprep.subr.bf16.mxu0 0
    %235 = vmatpush1.bf16.msra.mxu0 0
    %236 = vmatprep.subr.bf16.mxu0 0
    %237 = vmatpush1.bf16.msra.mxu0 0
    %238 = vmatprep.subr.bf16.mxu0 0
    %239 = vmatpush1.bf16.msra.mxu0 0
    %240 = vmatprep.subr.bf16.mxu0 0
    %241 = vmatpush1.bf16.msra.mxu0 0
    %242 = vmatprep.subr.bf16.mxu0 0
    %243 = vmatpush1.bf16.msra.mxu0 0
    %244 = vmatprep.subr.bf16.mxu0 0
    %245 = vmatpush1.bf16.msra.mxu0 0
    %246 = vmatprep.mubr.bf16.mxu0 0
    %247 = vmatmul.mubr.bf16.gmra.mrb[0].mxu0 %v212
    %v248 = vpop.f32.mrb[0].mxu0
    %v249 = vadd.f32 %v188, %v248
    %v250 = vpop.f32.mrb[0].mxu0
    %v251 = vpop.f32.mrb[0].mxu0
    %v252 = vadd.f32 %v191, %v251
    %v253 = vpop.f32.mrb[0].mxu0
    %254 = vdwg.mxu0
    %vm259 = vcmask 1042432
    %vm260 = vcmask 1046532
    %vm261 = vmor %vm259, %vm260
    %v262 = vrot.slane %v90, 5
    %v263 = vrot.slane %v262, 4
    %v264 = vrot.slane %v88, 5
    %v265 = vsel %vm261, %v263, %v264
    %v266 = vrot.slane %v91, 5
    %v267 = vrot.slane %v266, 4
    %v268 = vrot.slane %v89, 5
    %v269 = vsel %vm261, %v267, %v268
    %s270 = scalar_lea.vmem [#allocation6], 32
    %v271 = vld [vmem:[%s270] sm:$0xf]
    %v272 = vld [vmem:[%s270 + $0x4] sm:$0xf]
    %v273 = vld [vmem:[%s270 + $0x8] sm:$0xf]
    %v274 = vld [vmem:[%s270 + $0xc] sm:$0xf]
    %v275 = vunpack.c.l.b16 %v265
    %v276 = vunpack.c.l.b16 %v269
    %v277 = vpack.c.b16 %v276, %v275
    %v282 = vunpack.c.l.b16 %v271
    %v283 = vunpack.c.l.b16 %v272
    %v284 = vunpack.c.l.b16 %v273
    %v285 = vunpack.c.l.b16 %v274
    %v286 = vpack.c.b16 %v283, %v282
    %v287 = vpack.c.b16 %v285, %v284
    %v291 = vsel %vm149, %v277, 0
    %293 = vmatprep.subr.bf16.mxu0 0
    %294 = vmatpush1.bf16.msra.mxu0 %v286
    %295 = vmatprep.subr.bf16.mxu0 0
    %296 = vmatpush1.bf16.msra.mxu0 %v287
    %297 = vmatprep.subr.bf16.mxu0 0
    %298 = vmatpush1.bf16.msra.mxu0 0
    %299 = vmatprep.subr.bf16.mxu0 0
    %300 = vmatpush1.bf16.msra.mxu0 0
    %301 = vmatprep.subr.bf16.mxu0 0
    %302 = vmatpush1.bf16.msra.mxu0 0
    %303 = vmatprep.subr.bf16.mxu0 0
    %304 = vmatpush1.bf16.msra.mxu0 0
    %305 = vmatprep.subr.bf16.mxu0 0
    %306 = vmatpush1.bf16.msra.mxu0 0
    %307 = vmatprep.subr.bf16.mxu0 0
    %308 = vmatpush1.bf16.msra.mxu0 0
    %309 = vmatprep.subr.bf16.mxu0 0
    %310 = vmatpush1.bf16.msra.mxu0 0
    %311 = vmatprep.subr.bf16.mxu0 0
    %312 = vmatpush1.bf16.msra.mxu0 0
    %313 = vmatprep.subr.bf16.mxu0 0
    %314 = vmatpush1.bf16.msra.mxu0 0
    %315 = vmatprep.subr.bf16.mxu0 0
    %316 = vmatpush1.bf16.msra.mxu0 0
    %317 = vmatprep.subr.bf16.mxu0 0
    %318 = vmatpush1.bf16.msra.mxu0 0
    %319 = vmatprep.subr.bf16.mxu0 0
    %320 = vmatpush1.bf16.msra.mxu0 0
    %321 = vmatprep.subr.bf16.mxu0 0
    %322 = vmatpush1.bf16.msra.mxu0 0
    %323 = vmatprep.subr.bf16.mxu0 0
    %324 = vmatpush1.bf16.msra.mxu0 0
    %325 = vmatprep.mubr.bf16.mxu0 0
    %326 = vmatmul.mubr.bf16.gmra.mrb[0].mxu0 %v291
    %v327 = vpop.f32.mrb[0].mxu0
    %v328 = vadd.f32 0.0, %v327
    %v329 = vpop.f32.mrb[0].mxu0
    %v330 = vpop.f32.mrb[0].mxu0
    %v331 = vadd.f32 0.0, %v330
    %v332 = vpop.f32.mrb[0].mxu0
    %333 = vdwg.mxu0
    %v334 = vadd.f32 %v249, %v328
    %v335 = vadd.f32 %v252, %v331
    %vm336 = vsmask.f32 2304
    %vm337 = vsmask.f32 6416
    %vm338 = vmor %vm336, %vm337
    %v340 = vshrl.u32 %v90, 16
    %v342 = vrot.slane %v340, 5
    %v343 = vshll.u32 %v90, 16
    %v345 = vrot.slane %v343, 6
    %v346 = vor.u32 %v342, %v345
    %v347 = vrot.slane %v346, 4
    %v349 = vshrl.u32 %v92, 16
    %v351 = vrot.slane %v349, 5
    %v352 = vshll.u32 %v92, 16
    %v354 = vrot.slane %v352, 6
    %v355 = vor.u32 %v351, %v354
    %v356 = vsel %vm338, %v347, %v355
    %v358 = vshrl.u32 %v91, 16
    %v360 = vrot.slane %v358, 5
    %v361 = vshll.u32 %v91, 16
    %v363 = vrot.slane %v361, 6
    %v364 = vor.u32 %v360, %v363
    %v365 = vrot.slane %v364, 4
    %v367 = vshrl.u32 %v93, 16
    %v369 = vrot.slane %v367, 5
    %v370 = vshll.u32 %v93, 16
    %v372 = vrot.slane %v370, 6
    %v373 = vor.u32 %v369, %v372
    %v374 = vsel %vm338, %v365, %v373
    %s375 = scalar_lea.vmem [#allocation6], 48
    %v376 = vld [vmem:[%s375] sm:$0xf]
    %v377 = vld [vmem:[%s375 + $0x4] sm:$0xf]
    %v378 = vld [vmem:[%s375 + $0x8] sm:$0xf]
    %v379 = vld [vmem:[%s375 + $0xc] sm:$0xf]
    %v380 = vunpack.c.l.b16 %v356
    %v381 = vunpack.c.l.b16 %v374
    %v382 = vpack.c.b16 %v381, %v380
    %v387 = vunpack.c.l.b16 %v376
    %v388 = vunpack.c.l.b16 %v377
    %v389 = vunpack.c.l.b16 %v378
    %v390 = vunpack.c.l.b16 %v379
    %v391 = vpack.c.b16 %v388, %v387
    %v392 = vpack.c.b16 %v390, %v389
    %v396 = vsel %vm149, %v382, 0
    %398 = vmatprep.subr.bf16.mxu0 0
    %399 = vmatpush1.bf16.msra.mxu0 %v391
    %400 = vmatprep.subr.bf16.mxu0 0
    %401 = vmatpush1.bf16.msra.mxu0 %v392
    %402 = vmatprep.subr.bf16.mxu0 0
    %403 = vmatpush1.bf16.msra.mxu0 0
    %404 = vmatprep.subr.bf16.mxu0 0
    %405 = vmatpush1.bf16.msra.mxu0 0
    %406 = vmatprep.subr.bf16.mxu0 0
    %407 = vmatpush1.bf16.msra.mxu0 0
    %408 = vmatprep.subr.bf16.mxu0 0
    %409 = vmatpush1.bf16.msra.mxu0 0
    %410 = vmatprep.subr.bf16.mxu0 0
    %411 = vmatpush1.bf16.msra.mxu0 0
    %412 = vmatprep.subr.bf16.mxu0 0
    %413 = vmatpush1.bf16.msra.mxu0 0
    %414 = vmatprep.subr.bf16.mxu0 0
    %415 = vmatpush1.bf16.msra.mxu0 0
    %416 = vmatprep.subr.bf16.mxu0 0
    %417 = vmatpush1.bf16.msra.mxu0 0
    %418 = vmatprep.subr.bf16.mxu0 0
    %419 = vmatpush1.bf16.msra.mxu0 0
    %420 = vmatprep.subr.bf16.mxu0 0
    %421 = vmatpush1.bf16.msra.mxu0 0
    %422 = vmatprep.subr.bf16.mxu0 0
    %423 = vmatpush1.bf16.msra.mxu0 0
    %424 = vmatprep.subr.bf16.mxu0 0
    %425 = vmatpush1.bf16.msra.mxu0 0
    %426 = vmatprep.subr.bf16.mxu0 0
    %427 = vmatpush1.bf16.msra.mxu0 0
    %428 = vmatprep.subr.bf16.mxu0 0
    %429 = vmatpush1.bf16.msra.mxu0 0
    %430 = vmatprep.mubr.bf16.mxu0 0
    %431 = vmatmul.mubr.bf16.gmra.mrb[0].mxu0 %v396
    %v432 = vpop.f32.mrb[0].mxu0
    %v433 = vadd.f32 0.0, %v432
    %v434 = vpop.f32.mrb[0].mxu0
    %v435 = vpop.f32.mrb[0].mxu0
    %v436 = vadd.f32 0.0, %v435
    %v437 = vpop.f32.mrb[0].mxu0
    %438 = vdwg.mxu0
    %v439 = vadd.f32 %v334, %v433
    %v440 = vadd.f32 %v335, %v436
    %v441 = vlaneseq
    %v442 = vshrl.u32 %v441, 7
    %v443 = vlaneseq
    %v444 = vshrl.u32 %v443, 7
    %v445 = vsub.s32 0, %v444
    %v446 = vrot.slane %v78, %v445
    %v447 = vlaneseq
    %v448 = vshrl.u32 %v447, 7
    %v449 = vsub.s32 0, %v448
    %v450 = vrot.slane %v85, %v449
    %vm451 = vcmp.lt.s32.totalorder %v442, %v446
    %vm452 = vcmp.lt.s32.totalorder %v442, %v450
    %v453 = vsel %vm451, 1, 0
    %v454 = vsel %vm452, 1, 0
    %455 = vset.pattern.permute.xlu0 0
    %456 = vperm.xlu0 %455, %v453
    %v457 = vpop.permute.xlu0 %456
    %458 = vset.pattern.permute.xlu0 0
    %459 = vperm.xlu0 %458, %v454
    %v460 = vpop.permute.xlu0 %459
    %vm461 = vcmp.eq.s32.totalorder %v457, 1
    %vm462 = vcmp.eq.s32.totalorder %v460, 1
    %v463 = vsel %vm461, %v439, -inf
    %v464 = vsel %vm462, %v440, -inf
    %v465 = vrot.slane %v463, 4
    %v466 = vmax.f32 %v463, %v465
    %v467 = vrot.slane %v466, 2
    %v468 = vmax.f32 %v466, %v467
    %v469 = vrot.slane %v468, 1
    %v470 = vmax.f32 %v468, %v469
    %v471 = vrot.slane %v464, 4
    %v472 = vmax.f32 %v464, %v471
    %v473 = vrot.slane %v472, 2
    %v474 = vmax.f32 %v472, %v473
    %v475 = vrot.slane %v474, 1
    %v476 = vmax.f32 %v474, %v475
    %v477 = vld [vmem:[%s2] sm:$0x1]
    %v479 = vlaneseq
    %v480 = vshrl.u32 %v479, 7
    %v481 = vsub.s32 0, %v480
    %v482 = vrot.slane %v477, %v481
    %v484 = vadd.f32 %v470, %v482
    %v485 = vadd.f32 %v476, %v482
    %v486 = vmax.f32 %v484, 0.0
    %v487 = vmax.f32 %v485, 0.0
    %v490 = vrot.slane %v487, 7
    %vm491 = vcmask 1041409
    %v492 = vsel %vm491, %v490, %v486
    %494 = vst [vmem:[#allocation8] sm:$0x3] %v492
    // Predicated region
    $region26: #{tpu_custom_call.1} parent=1 // pred_check
      _
    $region27: #{tpu_custom_call.1} parent=1 // pred_check_branch
      %496 = sbr.rel (0) target = $region29
    $region28: #{tpu_custom_call.1} parent=1 // pred_region
      %s498 = ssub.s32 32, 32
      %499 = vsyncadd [#allocation5], %s498
      %s501 = sshll.u32 [#allocation8], 4
      %s502 = int_to_ptr.vmem [resolvable:$true] %s501
      %504 = dma.vmem_to_hbm [thread:$0]  %s502, 32, %s4, [#allocation5]
    $region29: #{tpu_custom_call.1} parent=1 // pred_fallthru
      _
    // Predicated region
    $region30: #{tpu_custom_call.1} parent=1 // pred_check
      _
    $region31: #{tpu_custom_call.1} parent=1 // pred_check_branch
      %506 = sbr.rel (0) target = $region33
    $region32: #{tpu_custom_call.1} parent=1 // pred_region
      %507 = dma.done [#allocation5], 32
    $region33: #{tpu_custom_call.1} parent=1 // pred_fallthru
      _
    %508 = vsyncpa [#allocation4], 1
    %509 = vsyncpa [#allocation7], 1
    %510 = vsyncpa [#allocation5], 1

</llo_original>
